<compile_context>
chip_gen: v7x
topology: tpu7x:2x2x1
jax: 0.10.0
libtpu: 0.0.40
codegen_flags: <defaults>
</compile_context>

<pallas_src>
import functools
import math

import jax
import jax.numpy as jnp
from jax.experimental import pallas as pl
from jax.experimental.pallas import tpu as pltpu

EPS = 1e-6

_DEFAULT_VMEM_BYTES = 64 * 1024 * 1024   # v7x per-TC VMEM (smallest generation)
_MAX_ROW_TILE = 8192                     # soft cap (bounds unrolled chunk count)


def _vmem_capacity_bytes() -> int:
    try:
        return int(pltpu.get_tpu_info().vmem_capacity_bytes)
    except Exception:
        return _DEFAULT_VMEM_BYTES


def _pick_c_chunk(n_cols: int) -> int:
    """Lane-chunk for the streaming passes: 512/256/128 lanes if they divide C,
    otherwise the full row (block always covers the full class dim)."""
    for cand in (512, 256, 128):
        if n_cols >= cand and n_cols % cand == 0:
            return cand
    return n_cols


def _pick_row_tile(n_rows: int, n_cols: int, itemsize: int, min_rows: int,
                   c_chunk: int, vmem_bytes: int) -> int:
    """Largest row tile whose double-buffered logits stream plus ~4 live f32
    (rows, c_chunk) temporaries fit in ~half of this generation's VMEM."""
    budget = vmem_bytes // 2
    per_row = 2 * n_cols * itemsize + 4 * c_chunk * 4 + 32
    cap = budget // max(1, per_row)
    cap = max(min_rows, (cap // min_rows) * min_rows)
    if cap >= n_rows:
        # Whole batch fits in one step.  Split in two (when legal) so the v7x
        # megacore "parallel" axis has >=2 steps to shard; on 1-TC parts the
        # extra step costs ~0.35us, which is noise at these sizes.
        half = -(-((n_rows + 1) // 2) // min_rows) * min_rows
        if min_rows <= half < n_rows:
            return half
        return n_rows
    return min(cap, _MAX_ROW_TILE)


def _esoftmax_loss_kernel(x_ref, tgt_ref, out_ref, *, training: bool,
                          ignore_index: int, c_chunk: int):
    tn, C = x_ref.shape
    n_chunks = C // c_chunk
    tgt = tgt_ref[...]                                   # (tn, 1) int32

    # ---- Pass 1: per-row max (stability) and sum (mean), streamed over C ----
    row_max = None
    row_sum = None
    for c in range(n_chunks):
        xc = x_ref[:, c * c_chunk:(c + 1) * c_chunk].astype(jnp.float32)
        cmax = jnp.max(xc, axis=-1, keepdims=True)
        csum = jnp.sum(xc, axis=-1, keepdims=True)
        if c == 0:
            row_max, row_sum = cmax, csum
        else:
            row_max = jnp.maximum(row_max, cmax)
            row_sum = row_sum + csum
    row_mean = row_sum * jnp.float32(1.0 / C)

    # ---- Pass 2: Z' = sum_c exp(x_c - max) * offs_c  and  x_t gather, streamed ----
    off_lo = jnp.float32(EPS if training else 0.0)
    z = jnp.zeros((tn, 1), jnp.float32)
    x_t = jnp.zeros((tn, 1), jnp.float32)
    for c in range(n_chunks):
        start = c * c_chunk
        xc = x_ref[:, start:start + c_chunk].astype(jnp.float32)
        e = jnp.exp(xc - row_max)                        # only full-width transcendental
        eo = jnp.where(xc < row_mean, off_lo * e, e)     # no mask_offset array
        z = z + jnp.sum(eo, axis=-1, keepdims=True)
        col = jax.lax.broadcasted_iota(jnp.int32, (tn, c_chunk), 1) + start
        x_t = x_t + jnp.sum(jnp.where(col == tgt, xc, jnp.float32(0.0)),
                            axis=-1, keepdims=True)

    # log p_t = (x_t - max) + log(offs_t) - log(Z').  log(offs_t) is a select so the
    # eval-mode -inf never feeds a multiply.  Rows with negative / out-of-range
    # targets gather x_t = 0 and are masked below (ignore_index) or produce a finite
    # value, matching the previous kernel's behaviour.
    log_off_lo = jnp.float32(math.log(EPS)) if training else jnp.float32(-jnp.inf)
    log_off_t = jnp.where(x_t < row_mean, log_off_lo, jnp.float32(0.0))
    logp_t = (x_t - row_max) + log_off_t - jnp.log(z)

    loss = jnp.where(tgt == ignore_index, jnp.float32(0.0), -logp_t)
    out_ref[...] = loss.astype(out_ref.dtype)


def esoftmax_loss(logits: jax.Array, target: jax.Array, *,
                  training: bool = True, ignore_index: int = -100,
                  row_tile: int | None = None) -> jax.Array:
    """ESoftmaxLoss(reduction='none', dim=-1).forward(logits, target)."""
    N, C = logits.shape
    itemsize = jnp.dtype(logits.dtype).itemsize
    min_rows = 16 if itemsize < 4 else 8              # bf16 packs 16 rows per sublane tile
    c_chunk = _pick_c_chunk(C)
    vmem_bytes = _vmem_capacity_bytes()
    if row_tile is None:
        row_tile = _pick_row_tile(N, C, itemsize, min_rows, c_chunk, vmem_bytes)

    tgt2d = target.astype(jnp.int32).reshape(N, 1)
    kernel = functools.partial(_esoftmax_loss_kernel, training=training,
                               ignore_index=ignore_index, c_chunk=c_chunk)

    grid = (pl.cdiv(N, row_tile),)                    # padded/masked tail block if N % tile != 0
    vmem_limit = min(int(vmem_bytes * 0.75), 112 * 1024 * 1024)

    out = pl.pallas_call(
        kernel,
        out_shape=jax.ShapeDtypeStruct((N, 1), jnp.float32),
        grid=grid,
        in_specs=[
            pl.BlockSpec((row_tile, C), lambda i: (i, 0)),
            pl.BlockSpec((row_tile, 1), lambda i: (i, 0)),
        ],
        out_specs=pl.BlockSpec((row_tile, 1), lambda i: (i, 0)),
        compiler_params=pltpu.CompilerParams(
            dimension_semantics=("parallel",),
            vmem_limit_bytes=vmem_limit,
        ),
    )(logits, tgt2d)
    return out[:, 0]


def _reference(logits, target, training=True, ignore_index=-100):
    x = logits.astype(jnp.float32)
    C = x.shape[-1]
    mean = jnp.mean(x, axis=-1, keepdims=True)
    offs = jnp.where(x < mean, EPS if training else 0.0, 1.0)
    p = jax.nn.softmax(x, axis=-1) * offs
    p = p / jnp.sum(p, axis=-1, keepdims=True)
    logp = jnp.log(p)
    idx = jnp.clip(target.astype(jnp.int32), 0, C - 1)
    picked = jnp.take_along_axis(logp, idx[:, None], axis=-1)[:, 0]
    return jnp.where(target == ignore_index, 0.0, -picked)


if __name__ == "__main__":
    key = jax.random.PRNGKey(0)
    k1, k2, k3, k4, k5, k6 = jax.random.split(key, 6)

    # Test 1: small f32 shape, 2-step grid, ignore_index handling.
    N, C = 16, 128
    logits = jax.random.normal(k1, (N, C), dtype=jnp.float32)
    target = jax.random.randint(k2, (N,), 0, C, dtype=jnp.int32)
    target = target.at[3].set(-100).at[9].set(-100)
    loss = esoftmax_loss(logits, target, training=True)
    jax.block_until_ready(loss)
    ref = _reference(logits, target, training=True)
    assert loss.shape == (N,)
    assert jnp.allclose(loss, ref, atol=2e-4, rtol=2e-4), (loss, ref)

    # Test 2: non-divisible batch -> cdiv grid with a padded/masked tail block.
    N2, C2 = 24, 256
    logits2 = jax.random.normal(k3, (N2, C2), dtype=jnp.float32) * 2.0
    target2 = jax.random.randint(k4, (N2,), 0, C2, dtype=jnp.int32)
    target2 = target2.at[0].set(-100).at[17].set(-100)
    loss2 = esoftmax_loss(logits2, target2, training=True, row_tile=16)
    jax.block_until_ready(loss2)
    ref2 = _reference(logits2, target2, training=True)
    assert jnp.allclose(loss2, ref2, atol=2e-4, rtol=2e-4), (loss2, ref2)

    # Test 3: bf16 logits stream at native width (16-row minimum sublane tile).
    N3, C3 = 32, 128
    logits3 = (jax.random.normal(k5, (N3, C3), dtype=jnp.float32)).astype(jnp.bfloat16)
    target3 = jax.random.randint(k6, (N3,), 0, C3, dtype=jnp.int32)
    target3 = target3.at[5].set(-100)
    loss3 = esoftmax_loss(logits3, target3, training=True)
    jax.block_until_ready(loss3)
    ref3 = _reference(logits3, target3, training=True)
    assert jnp.allclose(loss3, ref3, atol=5e-4, rtol=5e-4), (loss3, ref3)

    print("KERNEL_OK")
</pallas_src>

<mosaic_0001>
module attributes {stable_mosaic.version = 11 : i64} {
  func.func @_esoftmax_loss_kernel(%arg0: i32, %arg1: memref<8x128xf32, #tpu.memory_space<vmem>>, %arg2: memref<8x1xi32, #tpu.memory_space<vmem>>, %arg3: memref<8x1xf32, #tpu.memory_space<vmem>>) attributes {dimension_semantics = [#tpu.dimension_semantics<parallel>], iteration_bounds = array<i64: 2>, scalar_prefetch = 0 : i64, scratch_operands = 0 : i64, tpu.core_type = #tpu.core_type<tc>, window_params = [{transform_indices = @transform_0, window_bounds = array<i64: 8, 128>}, {transform_indices = @transform_1, window_bounds = array<i64: 8, 1>}, {transform_indices = @transform_2, window_bounds = array<i64: 8, 1>}]} {
    %c0 = arith.constant 0 : index
    %c0_0 = arith.constant 0 : index
    %0 = vector.load %arg2[%c0, %c0_0] : memref<8x1xi32, #tpu.memory_space<vmem>>, vector<8x1xi32>
    %c0_1 = arith.constant 0 : index
    %c0_2 = arith.constant 0 : index
    %1 = vector.load %arg1[%c0_1, %c0_2] : memref<8x128xf32, #tpu.memory_space<vmem>>, vector<8x128xf32>
    %cst = arith.constant dense<0xFF800000> : vector<8xf32>
    %2 = vector.multi_reduction <maximumf>, %1, %cst [1] : vector<8x128xf32> to vector<8xf32>
    %3 = vector.shape_cast %2 : vector<8xf32> to vector<8x1xf32>
    %cst_3 = arith.constant dense<0.000000e+00> : vector<8xf32>
    %4 = vector.multi_reduction <add>, %1, %cst_3 [1] : vector<8x128xf32> to vector<8xf32>
    %5 = vector.shape_cast %4 : vector<8xf32> to vector<8x1xf32>
    %cst_4 = arith.constant 7.812500e-03 : f32
    %6 = vector.broadcast %cst_4 : f32 to vector<8x1xf32>
    %7 = arith.mulf %5, %6 : vector<8x1xf32>
    %cst_5 = arith.constant 0.000000e+00 : f32
    %8 = vector.broadcast %cst_5 : f32 to vector<8x1xf32>
    %cst_6 = arith.constant 0.000000e+00 : f32
    %9 = vector.broadcast %cst_6 : f32 to vector<8x1xf32>
    %c0_7 = arith.constant 0 : index
    %c0_8 = arith.constant 0 : index
    %10 = vector.load %arg1[%c0_7, %c0_8] : memref<8x128xf32, #tpu.memory_space<vmem>>, vector<8x128xf32>
    %11 = vector.broadcast %3 : vector<8x1xf32> to vector<8x128xf32>
    %12 = arith.subf %10, %11 : vector<8x128xf32>
    %13 = math.exp %12 : vector<8x128xf32>
    %14 = vector.broadcast %7 : vector<8x1xf32> to vector<8x128xf32>
    %15 = arith.cmpf olt, %10, %14 : vector<8x128xf32>
    %cst_9 = arith.constant 9.99999997E-7 : f32
    %16 = vector.broadcast %cst_9 : f32 to vector<8x128xf32>
    %17 = arith.mulf %16, %13 : vector<8x128xf32>
    %18 = arith.select %15, %17, %13 : vector<8x128xi1>, vector<8x128xf32>
    %cst_10 = arith.constant dense<0.000000e+00> : vector<8xf32>
    %19 = vector.multi_reduction <add>, %18, %cst_10 [1] : vector<8x128xf32> to vector<8xf32>
    %20 = vector.shape_cast %19 : vector<8xf32> to vector<8x1xf32>
    %21 = arith.addf %8, %20 : vector<8x1xf32>
    %22 = tpu.iota {dimensions = array<i32: 1>} : vector<8x128xi32>
    %c0_i32 = arith.constant 0 : i32
    %23 = vector.broadcast %c0_i32 : i32 to vector<8x128xi32>
    %24 = arith.addi %22, %23 : vector<8x128xi32>
    %25 = vector.broadcast %0 : vector<8x1xi32> to vector<8x128xi32>
    %26 = arith.cmpi eq, %24, %25 : vector<8x128xi32>
    %cst_11 = arith.constant 0.000000e+00 : f32
    %27 = vector.broadcast %cst_11 : f32 to vector<8x128xf32>
    %28 = arith.select %26, %10, %27 : vector<8x128xi1>, vector<8x128xf32>
    %cst_12 = arith.constant dense<0.000000e+00> : vector<8xf32>
    %29 = vector.multi_reduction <add>, %28, %cst_12 [1] : vector<8x128xf32> to vector<8xf32>
    %30 = vector.shape_cast %29 : vector<8xf32> to vector<8x1xf32>
    %31 = arith.addf %9, %30 : vector<8x1xf32>
    %32 = arith.cmpf olt, %31, %7 : vector<8x1xf32>
    %cst_13 = arith.constant -13.8155107 : f32
    %cst_14 = arith.constant 0.000000e+00 : f32
    %33 = vector.broadcast %cst_13 : f32 to vector<8x1xf32>
    %34 = vector.broadcast %cst_14 : f32 to vector<8x1xf32>
    %35 = arith.select %32, %33, %34 : vector<8x1xi1>, vector<8x1xf32>
    %36 = arith.subf %31, %3 : vector<8x1xf32>
    %37 = arith.addf %36, %35 : vector<8x1xf32>
    %38 = math.log %21 : vector<8x1xf32>
    %39 = arith.subf %37, %38 : vector<8x1xf32>
    %c-100_i32 = arith.constant -100 : i32
    %40 = vector.broadcast %c-100_i32 : i32 to vector<8x1xi32>
    %41 = arith.cmpi eq, %0, %40 : vector<8x1xi32>
    %cst_15 = arith.constant 0.000000e+00 : f32
    %42 = vector.broadcast %cst_15 : f32 to vector<8x1xf32>
    %43 = arith.subf %42, %39 : vector<8x1xf32>
    %cst_16 = arith.constant 0.000000e+00 : f32
    %44 = vector.broadcast %cst_16 : f32 to vector<8x1xf32>
    %45 = arith.select %41, %44, %43 : vector<8x1xi1>, vector<8x1xf32>
    %c0_17 = arith.constant 0 : index
    %c0_18 = arith.constant 0 : index
    %46 = vector.load %arg3[%c0_17, %c0_18] : memref<8x1xf32, #tpu.memory_space<vmem>>, vector<8x1xf32>
    tpu.vector_store %arg3[%c0_17, %c0_18], %45 {strides = array<i32>} : memref<8x1xf32, #tpu.memory_space<vmem>>, vector<8x1xf32>,
    return
  }
  func.func @transform_0(%arg0: i32) -> (i32, i32) {
    %c0_i32 = arith.constant 0 : i32
    %c0_i32_0 = arith.constant 0 : i32
    return %arg0, %c0_i32 : i32, i32
  }
  func.func @transform_1(%arg0: i32) -> (i32, i32) {
    %c0_i32 = arith.constant 0 : i32
    %c0_i32_0 = arith.constant 0 : i32
    return %arg0, %c0_i32 : i32, i32
  }
  func.func @transform_2(%arg0: i32) -> (i32, i32) {
    %c0_i32 = arith.constant 0 : i32
    %c0_i32_0 = arith.constant 0 : i32
    return %arg0, %c0_i32 : i32, i32
  }
}

</mosaic_0001>

<llo_original>
// kernel: tpu_custom_call.1
$region0: #{tpu_custom_call.1}
  #allocation0 [shape = 'u32[]', space=smem, size = 0x4, offset = 0x4, fixed_abs, tag = 'smem constant byte address 0x4 - core index']
  #allocation1 [shape = 'u32[144,128]{1,0:T(1,128)}', space=vmem, size = 0x12000, scoped, tag = 'internal scratch']
  %s0 = inlined_call_operand.vmem [shape: f32[16,128], index: 0, kind: input, shape index: {}]
  %s1 = inlined_call_operand.vmem [shape: s32[16,1], index: 1, kind: input, shape index: {}]
  %s2 = inlined_call_operand.vmem [shape: f32[16,1], index: 2, kind: output, shape index: {}]
  %s3 = sld [smem:[#allocation0]]
  $region41: #{tpu_custom_call.1} parent=0
    _
  %s5 = ssub.s32 1, %s3
  %s6 = scalar_select 0, %s5, %s3
  loop: start=0, step=1, limit=4
  $region2: #{tpu_custom_call.1} parent=0 // loop_pre_header
    _
  $region3: #{tpu_custom_call.1} parent=0 // loop_header
    %s8 = sphi 0, %s12
    %p9 = scmp.ge.s32.totalorder %s8, 4
    %s18 = sphi 0, %s20
    %s21 = sphi 0, %s18
    %s22 = sphi 0, %s21
    %s38 = sphi 0, %s22
    %s44 = sphi 0, %s46
    %s47 = sphi 0, %s44
    %s48 = sphi 0, %s47
    %s64 = sphi 0, %s48
    %s70 = sphi 0, %s72
    %s73 = sphi 0, %s70
    %s74 = sphi 0, %s73
    %s90 = sphi 0, %s74
  $region4: #{tpu_custom_call.1} parent=0 // loop_header_branch
    %11 = sbr.rel (%p9) target = $region8
  $region5: #{tpu_custom_call.1} parent=0 // loop_body
    %s13 = ssub.s32 %s8, 1
    %s14 = ssub.s32 %s8, 2
    %s15 = sadd.s32 %s8, 1
    %s16 = ssub.s32 %s8, %s15
    %p17 = scmp.eq.s32.totalorder %s16, 0
    %s19 = sadd.s32 %s18, 1
    %s20 = scalar_select %p17, %s18, %s19
    %p23 = pneg %p17
    %p24 = scmp.eq.s32.totalorder %s8, 1
    %p25 = por %p23, %p24
    %p26 = scmp.ne.s32.totalorder %s18, %s21
    %p27 = scmp.eq.s32.totalorder %s8, 0
    %p28 = por %p26, %p27
    %p29 = scmp.ne.s32.totalorder %s18, %s21
    %p30 = scmp.eq.s32.totalorder %s13, 1
    %p31 = por %p29, %p30
    %p32 = scmp.ne.s32.totalorder %s21, %s22
    %p33 = scmp.eq.s32.totalorder %s13, 0
    %p34 = por %p32, %p33
    %p35 = scmp.ne.s32.totalorder %s21, %s22
    %p36 = scmp.eq.s32.totalorder %s14, 1
    %p37 = por %p35, %p36
    %p39 = scmp.ne.s32.totalorder %s22, %s38
    %p40 = scmp.eq.s32.totalorder %s14, 0
    %p41 = por %p39, %p40
    %s42 = ssub.s32 %s8, %s15
    %p43 = scmp.eq.s32.totalorder %s42, 0
    %s45 = sadd.s32 %s44, 1
    %s46 = scalar_select %p43, %s44, %s45
    %p49 = pneg %p43
    %p50 = scmp.eq.s32.totalorder %s8, 1
    %p51 = por %p49, %p50
    %p52 = scmp.ne.s32.totalorder %s44, %s47
    %p53 = scmp.eq.s32.totalorder %s8, 0
    %p54 = por %p52, %p53
    %p55 = scmp.ne.s32.totalorder %s44, %s47
    %p56 = scmp.eq.s32.totalorder %s13, 1
    %p57 = por %p55, %p56
    %p58 = scmp.ne.s32.totalorder %s47, %s48
    %p59 = scmp.eq.s32.totalorder %s13, 0
    %p60 = por %p58, %p59
    %p61 = scmp.ne.s32.totalorder %s47, %s48
    %p62 = scmp.eq.s32.totalorder %s14, 1
    %p63 = por %p61, %p62
    %p65 = scmp.ne.s32.totalorder %s48, %s64
    %p66 = scmp.eq.s32.totalorder %s14, 0
    %p67 = por %p65, %p66
    %s68 = ssub.s32 %s8, %s15
    %p69 = scmp.eq.s32.totalorder %s68, 0
    %s71 = sadd.s32 %s70, 1
    %s72 = scalar_select %p69, %s70, %s71
    %p75 = pneg %p69
    %p76 = scmp.eq.s32.totalorder %s8, 1
    %p77 = por %p75, %p76
    %p78 = scmp.ne.s32.totalorder %s70, %s73
    %p79 = scmp.eq.s32.totalorder %s8, 0
    %p80 = por %p78, %p79
    %p81 = scmp.ne.s32.totalorder %s70, %s73
    %p82 = scmp.eq.s32.totalorder %s13, 1
    %p83 = por %p81, %p82
    %p84 = scmp.ne.s32.totalorder %s73, %s74
    %p85 = scmp.eq.s32.totalorder %s13, 0
    %p86 = por %p84, %p85
    %p87 = scmp.ne.s32.totalorder %s73, %s74
    %p88 = scmp.eq.s32.totalorder %s14, 1
    %p89 = por %p87, %p88
    %p91 = scmp.ne.s32.totalorder %s74, %s90
    %p92 = scmp.eq.s32.totalorder %s14, 0
    %p93 = por %p91, %p92
    %p94 = scmp.le.s32.totalorder 1, %s8
    %p95 = scmp.lt.s32.totalorder %s8, 3
    %p96 = pnand %p94, %p95
    %p97 = pneg %p96
    // Predicated region
    $region9: #{tpu_custom_call.1} parent=5 // pred_check
      _
    $region10: #{tpu_custom_call.1} parent=5 // pred_check_branch
      %99 = sbr.rel (%p96) target = $region12
    $region11: #{tpu_custom_call.1} parent=5 // pred_region
      %s100 = ssub.s32 %s8, 1
    $region12: #{tpu_custom_call.1} parent=5 // pred_fallthru
      _
    %p101 = scmp.lt.s32.totalorder %s8, 2
    // Predicated region
    $region13: #{tpu_custom_call.1} parent=5 // pred_check
      %p102 = pneg %p101
    $region14: #{tpu_custom_call.1} parent=5 // pred_check_branch
      %104 = sbr.rel (%p102) target = $region16
    $region15: #{tpu_custom_call.1} parent=5 // pred_region
      // Predicated region
      $region17: #{tpu_custom_call.1} parent=15 // pred_check
        %p105 = pneg %p28
      $region18: #{tpu_custom_call.1} parent=15 // pred_check_branch
        %107 = sbr.rel (%p105) target = $region20
      $region19: #{tpu_custom_call.1} parent=15 // pred_region
        %p108 = scmp.lt.s32.totalorder %s8, 1
        %s109 = scalar_select %p108, %s8, 1
        %s110 = smul.addr %s109, 8
        %s111 = scalar_lea.vmem %s0, %s110
      $region20: #{tpu_custom_call.1} parent=15 // pred_fallthru
        _
      // Predicated region
      $region21: #{tpu_custom_call.1} parent=15 // pred_check
        %p112 = pneg %p54
      $region22: #{tpu_custom_call.1} parent=15 // pred_check_branch
        %114 = sbr.rel (%p112) target = $region24
      $region23: #{tpu_custom_call.1} parent=15 // pred_region
        %p115 = scmp.lt.s32.totalorder %s8, 1
        %s116 = scalar_select %p115, %s8, 1
        %s117 = smul.addr %s116, 8
        %s118 = scalar_lea.vmem %s1, %s117
      $region24: #{tpu_custom_call.1} parent=15 // pred_fallthru
        _
    $region16: #{tpu_custom_call.1} parent=5 // pred_fallthru
      _
    %p119 = scmp.le.s32.totalorder 1, %s8
    %p120 = scmp.lt.s32.totalorder %s8, 3
    %p121 = pnand %p119, %p120
    %p122 = pneg %p121
    // Predicated region
    $region25: #{tpu_custom_call.1} parent=5 // pred_check
      _
    $region26: #{tpu_custom_call.1} parent=5 // pred_check_branch
      %124 = sbr.rel (%p121) target = $region28
    $region27: #{tpu_custom_call.1} parent=5 // pred_region
      %s125 = ssub.s32 %s8, 1
      %p126 = scmp.lt.s32.totalorder %s13, 1
      %s127 = scalar_select %p126, %s13, 1
      %s128 = smul.addr %s127, 8
      %s129 = scalar_lea.vmem %s0, %s128
      %p130 = pneg %p34
      %p131 = pneg %p31
      %p132 = scmp.lt.s32.totalorder %s13, 1
      %s133 = scalar_select %p132, %s13, 1
      %s134 = smul.addr %s133, 8
      %s135 = scalar_lea.vmem %s1, %s134
      %p136 = pneg %p60
      %p137 = pneg %p57
      %p138 = pneg %p86
      %p139 = pneg %p83
      %p140 = scmp.lt.s32.totalorder %s13, 1
      %s141 = scalar_select %p140, %s13, 1
      %s142 = smul.addr %s141, 8
      %s143 = scalar_lea.vmem %s2, %s142
      %p144 = scmp.lt.s32.totalorder %s13, 1
      %s145 = scalar_select %p144, %s13, 1
      %s146 = smul.addr %s145, 8
      %s147 = scalar_lea.vmem %s0, %s146
      %p148 = scmp.lt.s32.totalorder %s13, 1
      %s149 = scalar_select %p148, %s13, 1
      %s150 = smul.addr %s149, 8
      %s151 = scalar_lea.vmem %s1, %s150
      %p152 = scmp.lt.s32.totalorder %s13, 1
      %s153 = scalar_select %p152, %s13, 1
      %s154 = smul.addr %s153, 8
      %s155 = scalar_lea.vmem %s2, %s154
      %v156 = vld [vmem:[%s151] sm:$0xff]
      %v157 = vld [vmem:[%s147] sm:$0xff]
      %158 = vmax.xlane.f32.xlu0 %v157
      %v159 = vpop.xlane.xlu0 %158
      %160 = vadd.xlane.f32.xlu0 %v157
      %v161 = vpop.xlane.xlu0 %160
      %v162 = vmul.f32 %v161, 0.0078125
      %v163 = vsub.f32 %v157, %v159
      %v164 = vmul.f32 %v163, 1.442695
      %v165 = vpow.pop %v164
      %vm166 = vcmp.lt.f32.partialorder %v157, %v162
      %v167 = vmul.f32 %v165, 1e-06
      %v168 = vsel %vm166, %v167, %v165
      %169 = vadd.xlane.f32.xlu0 %v168
      %v170 = vpop.xlane.xlu0 %169
      %v171 = vadd.f32 %v170, 0.0
      %v172 = vlaneseq
      %v173 = vand.u32 %v172, 127
      %174 = vset.pattern.permute.xlu0 0
      %175 = vperm.xlu0 %174, %v156
      %v176 = vpop.permute.xlu0 %175
      %vm177 = vcmp.eq.s32.totalorder %v173, %v176
      %v178 = vsel %vm177, %v157, 0.0
      %179 = vadd.xlane.f32.xlu0 %v178
      %v180 = vpop.xlane.xlu0 %179
      %v181 = vadd.f32 %v180, 0.0
      %vm182 = vcmp.lt.f32.partialorder %v181, %v162
      %v183 = vsel %vm182, -13.815511, 0.0
      %v184 = vsub.f32 %v181, %v159
      %v185 = vadd.f32 %v184, %v183
      %v186 = vlog2.pop %v171
      %v187 = vmul.f32 %v186, 0.6931472
      %v188 = vsub.f32 %v185, %v187
      %vm189 = vcmp.eq.s32.totalorder %v156, 4294967196
      %v190 = vsub.f32 0.0, %v188
      %v191 = vsel %vm189, 0.0, %v190
      %vm192 = vcmask 7168
      %193 = vst.msk [vmem:[%s155] sm:$0xff] %vm192, %v191
      %p194 = scmp.lt.s32.totalorder %s13, 1
      %s195 = scalar_select %p194, %s13, 1
      %s196 = smul.addr %s195, 8
      %s197 = scalar_lea.vmem %s2, %s196
      // Predicated region
      $region29: #{tpu_custom_call.1} parent=27 // pred_check
        %p198 = pneg %p83
      $region30: #{tpu_custom_call.1} parent=27 // pred_check_branch
        %200 = sbr.rel (%p198) target = $region32
      $region31: #{tpu_custom_call.1} parent=27 // pred_region
        _
      $region32: #{tpu_custom_call.1} parent=27 // pred_fallthru
        _
    $region28: #{tpu_custom_call.1} parent=5 // pred_fallthru
      _
    %p201 = scmp.le.s32.totalorder 2, %s8
    // Predicated region
    $region33: #{tpu_custom_call.1} parent=5 // pred_check
      %p202 = pneg %p201
    $region34: #{tpu_custom_call.1} parent=5 // pred_check_branch
      %204 = sbr.rel (%p202) target = $region36
    $region35: #{tpu_custom_call.1} parent=5 // pred_region
      %s205 = ssub.s32 %s8, 2
      // Predicated region
      $region37: #{tpu_custom_call.1} parent=35 // pred_check
        %p206 = pneg %p89
      $region38: #{tpu_custom_call.1} parent=35 // pred_check_branch
        %208 = sbr.rel (%p206) target = $region40
      $region39: #{tpu_custom_call.1} parent=35 // pred_region
        %p209 = scmp.lt.s32.totalorder %s14, 1
        %s210 = scalar_select %p209, %s14, 1
        %s211 = smul.addr %s210, 8
        %s212 = scalar_lea.vmem %s2, %s211
      $region40: #{tpu_custom_call.1} parent=35 // pred_fallthru
        _
    $region36: #{tpu_custom_call.1} parent=5 // pred_fallthru
      _
  $region6: #{tpu_custom_call.1} parent=0 // loop_footer
    %s12 = sadd.s32 1, %s8
  $region7: #{tpu_custom_call.1} parent=0 // loop_footer_branch
    %7 = sbr.rel target = $region3
  $region8: #{tpu_custom_call.1} parent=0 // loop_exit
    _

</llo_original>
